<compile_context>
chip_gen: v7x
topology: tpu7x:2x2x1
jax: 0.10.0
libtpu: 0.0.40
codegen_flags: <defaults>
</compile_context>

<pallas_src>
import functools

import numpy as np
import jax
import jax.numpy as jnp
from jax import lax
from jax.experimental import pallas as pl
from jax.experimental.pallas import tpu as pltpu

# ---------------------------------------------------------------------------
# Matcher hyper-parameters (same defaults as the PyTorch module)
# ---------------------------------------------------------------------------
CLASS_WEIGHT = 1.0
COORD_WEIGHT = 1.0
FOCAL_ALPHA = 0.25
FOCAL_GAMMA = 2.0            # kernel hard-codes gamma == 2 as an exact square
NUM_SAMPLE_POINTS = 16       # module default is 100; small for the test


# ---------------------------------------------------------------------------
# Pallas kernel: one (tile_p, tile_t) tile of the cost matrix per grid step
# ---------------------------------------------------------------------------
def _matcher_cost_kernel(class_weight, coord_weight, alpha, num_samples, chunk,
                         logits_ref, onehot_ref, ps_ref, ts_ref, c_ref):
    tile_p = logits_ref.shape[0]
    tile_t = c_ref.shape[1]

    # ---- focal classification cost on the (tile_p, C) logits -----------------
    x = logits_ref[...]                                   # (tile_p, C)
    e = jnp.exp(-jnp.abs(x))
    inv = 1.0 / (1.0 + e)
    prob = jnp.where(x >= 0.0, inv, e * inv)              # stable sigmoid(x)
    sp_pos = jnp.maximum(x, 0.0) + jnp.log(1.0 + e)       # softplus(x)  = -log(1-p)
    sp_neg = sp_pos - x                                    # softplus(-x) = -log(p)
    one_m_p = 1.0 - prob
    diff = (alpha * (one_m_p * one_m_p) * sp_neg           # gamma == 2 -> square
            - (1.0 - alpha) * (prob * prob) * sp_pos)      # (tile_p, C)

    num_classes = diff.shape[1]
    if num_classes <= 16:
        # exact per-class gather (pure VPU select/FMA, exact in f32)
        cc = jnp.zeros((tile_p, tile_t), jnp.float32)
        for c in range(num_classes):                       # static, C is tiny
            cc = cc + diff[:, c:c + 1] * onehot_ref[pl.ds(c, 1), :]
        c_ref[...] = class_weight * cc
    else:
        # one-hot MXU gather: (tile_p, C) @ (C, tile_t)
        c_ref[...] = class_weight * jnp.dot(
            diff, onehot_ref[...], preferred_element_type=jnp.float32)

    # ---- L1 cdist over bezier samples, register-resident per-chunk acc -------
    n_chunks = tile_p // chunk

    def chunk_body(ci, carry):
        r0 = pl.multiple_of(ci * chunk, chunk)
        ps_c = ps_ref[pl.ds(r0, chunk), :]                 # (chunk, 2S)
        acc = jnp.zeros((chunk, tile_t), jnp.float32)
        for s in range(num_samples):                       # static unroll over samples
            tsx = ts_ref[pl.ds(s, 1), :]                   # (1, tile_t) row, re-loaded
            tsy = ts_ref[pl.ds(num_samples + s, 1), :]
            acc = (acc
                   + jnp.abs(ps_c[:, s:s + 1] - tsx)
                   + jnp.abs(ps_c[:, num_samples + s:num_samples + s + 1] - tsy))
        row = pl.ds(r0, chunk)
        c_ref[row, :] = c_ref[row, :] + coord_weight * acc # single RMW per chunk
        return carry

    lax.fori_loop(0, n_chunks, chunk_body, 0)


# ---------------------------------------------------------------------------
# Jitted wrapper: prep (pad / pack / one-hot / bezier sampling) + pallas_call
# ---------------------------------------------------------------------------
def bernstein_matrix(num_sample_points):
    t = np.linspace(0.0, 1.0, num_sample_points)
    comb = np.array([1.0, 3.0, 3.0, 1.0])
    B = np.stack([comb[k] * t ** k * (1.0 - t) ** (3 - k) for k in range(4)],
                 axis=1)                                   # (S, 4)
    return B.astype(np.float32)


def _round_up(x, m):
    return ((x + m - 1) // m) * m


@functools.partial(jax.jit, static_argnums=(4,))
def matcher_cost_matrix(pred_logits, pred_beziers, tgt_ids, tgt_beziers,
                        num_sample_points):
    """Full cost matrix (P, T) via a (P, T)-tiled, lane-dense Pallas kernel."""
    assert FOCAL_GAMMA == 2.0, "kernel hard-codes focal gamma == 2"
    bs, nq, num_classes = pred_logits.shape
    P = bs * nq
    T = int(tgt_ids.shape[0])
    S = int(num_sample_points)

    T_pad = _round_up(T, 128)                 # lane-dense output columns
    tile_t = min(T_pad, 512)

    # P tiling: even number of tiles >= 2 (both v7x TCs busy), <= ~512 rows/tile,
    # rounded to 8 so per-tile row padding is <= 7.
    n_p_tiles = max(2, pl.cdiv(P, 512))
    if n_p_tiles % 2:
        n_p_tiles += 1
    tile_p = _round_up(pl.cdiv(P, n_p_tiles), 8)

    # chunk rows per register-resident accumulator (acc <= 8 vregs); must divide tile_p
    chunk = 8
    for cand in (32, 16, 8):
        if tile_p % cand == 0 and cand * tile_t * 4 <= 32 * 1024:
            chunk = cand
            break

    P_pad = tile_p * n_p_tiles

    # -- logits (P_pad, C), f32 ------------------------------------------------
    logits = pred_logits.reshape(P, num_classes).astype(jnp.float32)
    logits = jnp.pad(logits, ((0, P_pad - P), (0, 0)))

    # -- one-hot gather matrix (C, T_pad): onehot[c, t] = (tgt_ids[t] == c) -----
    onehot = (jnp.arange(num_classes)[:, None] == tgt_ids[None, :]).astype(jnp.float32)
    onehot = jnp.pad(onehot, ((0, 0), (0, T_pad - T)))

    # -- bezier sample points, pred & target, same HIGHEST-precision path -------
    bern = jnp.asarray(bernstein_matrix(S))                # (S, 4)

    ctrl = pred_beziers.reshape(P, 4, 2).astype(jnp.float32)
    ps = jnp.einsum("sk,nkd->nds", bern, ctrl,
                    precision=lax.Precision.HIGHEST)       # (P, 2, S)
    ps = ps.reshape(P, 2 * S)                              # [x samples | y samples]
    ps = jnp.pad(ps, ((0, P_pad - P), (0, 0)))

    tgt = tgt_beziers.astype(jnp.float32)                  # (T, 4, 2)
    ts = jnp.einsum("sk,tkd->dst", bern, tgt,
                    precision=lax.Precision.HIGHEST)       # (2, S, T)
    ts = ts.reshape(2 * S, T)
    ts = jnp.pad(ts, ((0, 0), (0, T_pad - T)))

    kernel = functools.partial(_matcher_cost_kernel, CLASS_WEIGHT, COORD_WEIGHT,
                               FOCAL_ALPHA, S, chunk)
    cost = pl.pallas_call(
        kernel,
        out_shape=jax.ShapeDtypeStruct((P_pad, T_pad), jnp.float32),
        grid_spec=pltpu.PrefetchScalarGridSpec(
            num_scalar_prefetch=0,
            grid=(P_pad // tile_p, T_pad // tile_t),
            in_specs=[
                pl.BlockSpec((tile_p, num_classes), lambda i, j: (i, 0)),  # logits
                pl.BlockSpec((num_classes, tile_t), lambda i, j: (0, j)),  # one-hot
                pl.BlockSpec((tile_p, 2 * S), lambda i, j: (i, 0)),        # pred samples
                pl.BlockSpec((2 * S, tile_t), lambda i, j: (0, j)),        # tgt samples
            ],
            out_specs=pl.BlockSpec((tile_p, tile_t), lambda i, j: (i, j)),
        ),
        compiler_params=pltpu.CompilerParams(
            dimension_semantics=("parallel", "parallel")),
    )(logits, onehot, ps, ts)

    return cost[:P, :T]


# ---------------------------------------------------------------------------
# Glue: per-batch Hungarian assignment (host-side, combinatorial)
# ---------------------------------------------------------------------------
def _assign(cost):
    # TODO(synk): Hungarian assignment (linear_sum_assignment) is combinatorial,
    # host-side work with no Pallas equivalent; scipy when available, greedy otherwise.
    try:
        from scipy.optimize import linear_sum_assignment
        r, c = linear_sum_assignment(cost)
        return np.asarray(r, np.int64), np.asarray(c, np.int64)
    except Exception:
        cost = np.array(cost, copy=True)
        n = min(cost.shape)
        rows, cols = [], []
        for _ in range(n):
            i, j = np.unravel_index(np.argmin(cost), cost.shape)
            rows.append(i); cols.append(j)
            cost[i, :] = np.inf; cost[:, j] = np.inf
        order = np.argsort(rows)
        return (np.asarray(rows, np.int64)[order],
                np.asarray(cols, np.int64)[order])


def bezier_hungarian_matcher(outputs, targets,
                             num_sample_points=NUM_SAMPLE_POINTS):
    pred_logits = outputs["pred_logits"]      # (B, Q, C)
    pred_beziers = outputs["pred_beziers"]    # (B, Q, 8)
    bs, num_queries = pred_logits.shape[:2]

    tgt_ids = jnp.concatenate([v["labels"] for v in targets])          # (T,)
    tgt_beziers = jnp.concatenate([v["beziers"] for v in targets])     # (T, 4, 2)
    sizes = [int(v["beziers"].shape[0]) for v in targets]

    C = matcher_cost_matrix(pred_logits, pred_beziers, tgt_ids, tgt_beziers,
                            num_sample_points)
    C = jax.block_until_ready(C)
    C_np = np.asarray(C).reshape(bs, num_queries, -1)

    indices = []
    offset = 0
    for b, sz in enumerate(sizes):
        indices.append(_assign(C_np[b, :, offset:offset + sz]))
        offset += sz
    return indices, C_np


# ---------------------------------------------------------------------------
# Pure numpy reference (mirrors the PyTorch forward) for correctness check
# ---------------------------------------------------------------------------
def _reference_cost(pred_logits, pred_beziers, tgt_ids, tgt_beziers,
                    num_sample_points):
    bs, nq, _ = pred_logits.shape
    P = bs * nq
    logits = pred_logits.reshape(P, -1).astype(np.float64)
    prob = 1.0 / (1.0 + np.exp(-logits))
    neg = (1 - FOCAL_ALPHA) * prob ** FOCAL_GAMMA * -np.log(1 - prob + 1e-8)
    pos = FOCAL_ALPHA * (1 - prob) ** FOCAL_GAMMA * -np.log(prob + 1e-8)
    cost_class = pos[:, tgt_ids] - neg[:, tgt_ids]

    B = bernstein_matrix(num_sample_points).astype(np.float64)          # (S, 4)
    out_ctrl = pred_beziers.reshape(P, 4, 2).astype(np.float64)
    out_s = np.einsum("sk,nkd->nsd", B, out_ctrl).reshape(P, -1)
    tgt_s = np.einsum("sk,nkd->nsd", B,
                      tgt_beziers.astype(np.float64)).reshape(len(tgt_ids), -1)
    cost_coord = np.abs(out_s[:, None, :] - tgt_s[None, :, :]).sum(-1)
    C = CLASS_WEIGHT * cost_class + COORD_WEIGHT * cost_coord
    return C.reshape(bs, nq, -1)


# ---------------------------------------------------------------------------
if __name__ == "__main__":
    key = jax.random.PRNGKey(0)
    bs, num_queries, num_classes = 2, 8, 4
    sizes = [3, 2]                                   # targets per batch element

    k1, k2, k3, k4 = jax.random.split(key, 4)
    pred_logits = jax.random.normal(k1, (bs, num_queries, num_classes),
                                    dtype=jnp.float32)
    pred_beziers = jax.random.normal(k2, (bs, num_queries, 8),
                                     dtype=jnp.float32)

    tgt_keys = jax.random.split(k3, len(sizes))
    bez_keys = jax.random.split(k4, len(sizes))
    targets = []
    for i, n in enumerate(sizes):
        labels = jax.random.randint(tgt_keys[i], (n,), 0, num_classes)
        beziers = jax.random.uniform(bez_keys[i], (n, 4, 2), dtype=jnp.float32)
        targets.append({"labels": labels, "beziers": beziers})

    outputs = {"pred_logits": pred_logits, "pred_beziers": pred_beziers}

    indices, C_kernel = bezier_hungarian_matcher(outputs, targets)

    # correctness check against a numpy reference of the PyTorch math
    tgt_ids_np = np.concatenate([np.asarray(t["labels"]) for t in targets])
    tgt_bez_np = np.concatenate([np.asarray(t["beziers"]) for t in targets])
    C_ref = _reference_cost(np.asarray(pred_logits), np.asarray(pred_beziers),
                            tgt_ids_np, tgt_bez_np, NUM_SAMPLE_POINTS)
    np.testing.assert_allclose(C_kernel, C_ref, rtol=1e-4, atol=1e-4)

    # touch the match result so everything is materialized
    _ = [(np.asarray(i, np.int64), np.asarray(j, np.int64)) for i, j in indices]
    print("KERNEL_OK")
</pallas_src>

<mosaic_0001>
module attributes {stable_mosaic.version = 11 : i64} {
  func.func @_matcher_cost_kernel(%arg0: i32, %arg1: i32, %arg2: memref<8x4xf32, #tpu.memory_space<vmem>>, %arg3: memref<4x128xf32, #tpu.memory_space<vmem>>, %arg4: memref<8x32xf32, #tpu.memory_space<vmem>>, %arg5: memref<32x128xf32, #tpu.memory_space<vmem>>, %arg6: memref<8x128xf32, #tpu.memory_space<vmem>>) attributes {dimension_semantics = [#tpu.dimension_semantics<parallel>, #tpu.dimension_semantics<parallel>], iteration_bounds = array<i64: 2, 1>, scalar_prefetch = 0 : i64, scratch_operands = 0 : i64, tpu.core_type = #tpu.core_type<tc>, window_params = [{transform_indices = @transform_0, window_bounds = array<i64: 8, 4>}, {transform_indices = @transform_1, window_bounds = array<i64: 4, 128>}, {transform_indices = @transform_2, window_bounds = array<i64: 8, 32>}, {transform_indices = @transform_3, window_bounds = array<i64: 32, 128>}, {transform_indices = @transform_4, window_bounds = array<i64: 8, 128>}]} {
    %c0 = arith.constant 0 : index
    %c0_0 = arith.constant 0 : index
    %0 = vector.load %arg2[%c0, %c0_0] : memref<8x4xf32, #tpu.memory_space<vmem>>, vector<8x4xf32>
    %1 = math.absf %0 : vector<8x4xf32>
    %cst = arith.constant 0.000000e+00 : f32
    %2 = vector.broadcast %cst : f32 to vector<8x4xf32>
    %3 = arith.subf %2, %1 : vector<8x4xf32>
    %4 = math.exp %3 : vector<8x4xf32>
    %cst_1 = arith.constant 1.000000e+00 : f32
    %5 = vector.broadcast %cst_1 : f32 to vector<8x4xf32>
    %6 = arith.addf %5, %4 : vector<8x4xf32>
    %cst_2 = arith.constant 1.000000e+00 : f32
    %7 = vector.broadcast %cst_2 : f32 to vector<8x4xf32>
    %8 = arith.divf %7, %6 : vector<8x4xf32>
    %cst_3 = arith.constant 0.000000e+00 : f32
    %9 = vector.broadcast %cst_3 : f32 to vector<8x4xf32>
    %10 = arith.cmpf oge, %0, %9 : vector<8x4xf32>
    %11 = arith.mulf %4, %8 : vector<8x4xf32>
    %12 = arith.select %10, %8, %11 : vector<8x4xi1>, vector<8x4xf32>
    %cst_4 = arith.constant 0.000000e+00 : f32
    %13 = vector.broadcast %cst_4 : f32 to vector<8x4xf32>
    %14 = arith.maximumf %0, %13 : vector<8x4xf32>
    %cst_5 = arith.constant 1.000000e+00 : f32
    %15 = vector.broadcast %cst_5 : f32 to vector<8x4xf32>
    %16 = arith.addf %15, %4 : vector<8x4xf32>
    %17 = math.log %16 : vector<8x4xf32>
    %18 = arith.addf %14, %17 : vector<8x4xf32>
    %19 = arith.subf %18, %0 : vector<8x4xf32>
    %cst_6 = arith.constant 1.000000e+00 : f32
    %20 = vector.broadcast %cst_6 : f32 to vector<8x4xf32>
    %21 = arith.subf %20, %12 : vector<8x4xf32>
    %22 = arith.mulf %21, %21 : vector<8x4xf32>
    %cst_7 = arith.constant 2.500000e-01 : f32
    %23 = vector.broadcast %cst_7 : f32 to vector<8x4xf32>
    %24 = arith.mulf %23, %22 : vector<8x4xf32>
    %25 = arith.mulf %24, %19 : vector<8x4xf32>
    %26 = arith.mulf %12, %12 : vector<8x4xf32>
    %cst_8 = arith.constant 7.500000e-01 : f32
    %27 = vector.broadcast %cst_8 : f32 to vector<8x4xf32>
    %28 = arith.mulf %27, %26 : vector<8x4xf32>
    %29 = arith.mulf %28, %18 : vector<8x4xf32>
    %30 = arith.subf %25, %29 : vector<8x4xf32>
    %cst_9 = arith.constant 0.000000e+00 : f32
    %31 = vector.broadcast %cst_9 : f32 to vector<8x128xf32>
    %32 = vector.extract_strided_slice %30 {offsets = [0, 0], sizes = [8, 1], strides = [1, 1]} : vector<8x4xf32> to vector<8x1xf32>
    %c0_10 = arith.constant 0 : index
    %c0_11 = arith.constant 0 : index
    %33 = vector.load %arg3[%c0_10, %c0_11] : memref<4x128xf32, #tpu.memory_space<vmem>>, vector<1x128xf32>
    %34 = vector.broadcast %32 : vector<8x1xf32> to vector<8x128xf32>
    %35 = vector.broadcast %33 : vector<1x128xf32> to vector<8x128xf32>
    %36 = arith.mulf %34, %35 : vector<8x128xf32>
    %37 = arith.addf %31, %36 : vector<8x128xf32>
    %38 = vector.extract_strided_slice %30 {offsets = [0, 1], sizes = [8, 1], strides = [1, 1]} : vector<8x4xf32> to vector<8x1xf32>
    %c1 = arith.constant 1 : index
    %c0_12 = arith.constant 0 : index
    %39 = vector.load %arg3[%c1, %c0_12] : memref<4x128xf32, #tpu.memory_space<vmem>>, vector<1x128xf32>
    %40 = vector.broadcast %38 : vector<8x1xf32> to vector<8x128xf32>
    %41 = vector.broadcast %39 : vector<1x128xf32> to vector<8x128xf32>
    %42 = arith.mulf %40, %41 : vector<8x128xf32>
    %43 = arith.addf %37, %42 : vector<8x128xf32>
    %44 = vector.extract_strided_slice %30 {offsets = [0, 2], sizes = [8, 1], strides = [1, 1]} : vector<8x4xf32> to vector<8x1xf32>
    %c2 = arith.constant 2 : index
    %c0_13 = arith.constant 0 : index
    %45 = vector.load %arg3[%c2, %c0_13] : memref<4x128xf32, #tpu.memory_space<vmem>>, vector<1x128xf32>
    %46 = vector.broadcast %44 : vector<8x1xf32> to vector<8x128xf32>
    %47 = vector.broadcast %45 : vector<1x128xf32> to vector<8x128xf32>
    %48 = arith.mulf %46, %47 : vector<8x128xf32>
    %49 = arith.addf %43, %48 : vector<8x128xf32>
    %50 = vector.extract_strided_slice %30 {offsets = [0, 3], sizes = [8, 1], strides = [1, 1]} : vector<8x4xf32> to vector<8x1xf32>
    %c3 = arith.constant 3 : index
    %c0_14 = arith.constant 0 : index
    %51 = vector.load %arg3[%c3, %c0_14] : memref<4x128xf32, #tpu.memory_space<vmem>>, vector<1x128xf32>
    %52 = vector.broadcast %50 : vector<8x1xf32> to vector<8x128xf32>
    %53 = vector.broadcast %51 : vector<1x128xf32> to vector<8x128xf32>
    %54 = arith.mulf %52, %53 : vector<8x128xf32>
    %55 = arith.addf %49, %54 : vector<8x128xf32>
    %cst_15 = arith.constant 1.000000e+00 : f32
    %56 = vector.broadcast %cst_15 : f32 to vector<8x128xf32>
    %57 = arith.mulf %56, %55 : vector<8x128xf32>
    %c0_16 = arith.constant 0 : index
    %c0_17 = arith.constant 0 : index
    %58 = vector.load %arg6[%c0_16, %c0_17] : memref<8x128xf32, #tpu.memory_space<vmem>>, vector<8x128xf32>
    tpu.vector_store %arg6[%c0_16, %c0_17], %57 {strides = array<i32>} : memref<8x128xf32, #tpu.memory_space<vmem>>, vector<8x128xf32>,
    %c0_i32 = arith.constant 0 : i32
    %c8_i32 = arith.constant 8 : i32
    %59 = arith.muli %c0_i32, %c8_i32 : i32
    %60 = tpu.assume_multiple %59, 8 : i32
    %61 = arith.index_cast %60 : i32 to index
    %c0_18 = arith.constant 0 : index
    %62 = vector.load %arg4[%61, %c0_18] : memref<8x32xf32, #tpu.memory_space<vmem>>, vector<8x32xf32>
    %cst_19 = arith.constant 0.000000e+00 : f32
    %63 = vector.broadcast %cst_19 : f32 to vector<8x128xf32>
    %c0_20 = arith.constant 0 : index
    %c0_21 = arith.constant 0 : index
    %64 = vector.load %arg5[%c0_20, %c0_21] : memref<32x128xf32, #tpu.memory_space<vmem>>, vector<1x128xf32>
    %c16 = arith.constant 16 : index
    %c0_22 = arith.constant 0 : index
    %65 = vector.load %arg5[%c16, %c0_22] : memref<32x128xf32, #tpu.memory_space<vmem>>, vector<1x128xf32>
    %66 = vector.extract_strided_slice %62 {offsets = [0, 0], sizes = [8, 1], strides = [1, 1]} : vector<8x32xf32> to vector<8x1xf32>
    %67 = vector.broadcast %66 : vector<8x1xf32> to vector<8x128xf32>
    %68 = vector.broadcast %64 : vector<1x128xf32> to vector<8x128xf32>
    %69 = arith.subf %67, %68 : vector<8x128xf32>
    %70 = math.absf %69 : vector<8x128xf32>
    %71 = arith.addf %63, %70 : vector<8x128xf32>
    %72 = vector.extract_strided_slice %62 {offsets = [0, 16], sizes = [8, 1], strides = [1, 1]} : vector<8x32xf32> to vector<8x1xf32>
    %73 = vector.broadcast %72 : vector<8x1xf32> to vector<8x128xf32>
    %74 = vector.broadcast %65 : vector<1x128xf32> to vector<8x128xf32>
    %75 = arith.subf %73, %74 : vector<8x128xf32>
    %76 = math.absf %75 : vector<8x128xf32>
    %77 = arith.addf %71, %76 : vector<8x128xf32>
    %c1_23 = arith.constant 1 : index
    %c0_24 = arith.constant 0 : index
    %78 = vector.load %arg5[%c1_23, %c0_24] : memref<32x128xf32, #tpu.memory_space<vmem>>, vector<1x128xf32>
    %c17 = arith.constant 17 : index
    %c0_25 = arith.constant 0 : index
    %79 = vector.load %arg5[%c17, %c0_25] : memref<32x128xf32, #tpu.memory_space<vmem>>, vector<1x128xf32>
    %80 = vector.extract_strided_slice %62 {offsets = [0, 1], sizes = [8, 1], strides = [1, 1]} : vector<8x32xf32> to vector<8x1xf32>
    %81 = vector.broadcast %80 : vector<8x1xf32> to vector<8x128xf32>
    %82 = vector.broadcast %78 : vector<1x128xf32> to vector<8x128xf32>
    %83 = arith.subf %81, %82 : vector<8x128xf32>
    %84 = math.absf %83 : vector<8x128xf32>
    %85 = arith.addf %77, %84 : vector<8x128xf32>
    %86 = vector.extract_strided_slice %62 {offsets = [0, 17], sizes = [8, 1], strides = [1, 1]} : vector<8x32xf32> to vector<8x1xf32>
    %87 = vector.broadcast %86 : vector<8x1xf32> to vector<8x128xf32>
    %88 = vector.broadcast %79 : vector<1x128xf32> to vector<8x128xf32>
    %89 = arith.subf %87, %88 : vector<8x128xf32>
    %90 = math.absf %89 : vector<8x128xf32>
    %91 = arith.addf %85, %90 : vector<8x128xf32>
    %c2_26 = arith.constant 2 : index
    %c0_27 = arith.constant 0 : index
    %92 = vector.load %arg5[%c2_26, %c0_27] : memref<32x128xf32, #tpu.memory_space<vmem>>, vector<1x128xf32>
    %c18 = arith.constant 18 : index
    %c0_28 = arith.constant 0 : index
    %93 = vector.load %arg5[%c18, %c0_28] : memref<32x128xf32, #tpu.memory_space<vmem>>, vector<1x128xf32>
    %94 = vector.extract_strided_slice %62 {offsets = [0, 2], sizes = [8, 1], strides = [1, 1]} : vector<8x32xf32> to vector<8x1xf32>
    %95 = vector.broadcast %94 : vector<8x1xf32> to vector<8x128xf32>
    %96 = vector.broadcast %92 : vector<1x128xf32> to vector<8x128xf32>
    %97 = arith.subf %95, %96 : vector<8x128xf32>
    %98 = math.absf %97 : vector<8x128xf32>
    %99 = arith.addf %91, %98 : vector<8x128xf32>
    %100 = vector.extract_strided_slice %62 {offsets = [0, 18], sizes = [8, 1], strides = [1, 1]} : vector<8x32xf32> to vector<8x1xf32>
    %101 = vector.broadcast %100 : vector<8x1xf32> to vector<8x128xf32>
    %102 = vector.broadcast %93 : vector<1x128xf32> to vector<8x128xf32>
    %103 = arith.subf %101, %102 : vector<8x128xf32>
    %104 = math.absf %103 : vector<8x128xf32>
    %105 = arith.addf %99, %104 : vector<8x128xf32>
    %c3_29 = arith.constant 3 : index
    %c0_30 = arith.constant 0 : index
    %106 = vector.load %arg5[%c3_29, %c0_30] : memref<32x128xf32, #tpu.memory_space<vmem>>, vector<1x128xf32>
    %c19 = arith.constant 19 : index
    %c0_31 = arith.constant 0 : index
    %107 = vector.load %arg5[%c19, %c0_31] : memref<32x128xf32, #tpu.memory_space<vmem>>, vector<1x128xf32>
    %108 = vector.extract_strided_slice %62 {offsets = [0, 3], sizes = [8, 1], strides = [1, 1]} : vector<8x32xf32> to vector<8x1xf32>
    %109 = vector.broadcast %108 : vector<8x1xf32> to vector<8x128xf32>
    %110 = vector.broadcast %106 : vector<1x128xf32> to vector<8x128xf32>
    %111 = arith.subf %109, %110 : vector<8x128xf32>
    %112 = math.absf %111 : vector<8x128xf32>
    %113 = arith.addf %105, %112 : vector<8x128xf32>
    %114 = vector.extract_strided_slice %62 {offsets = [0, 19], sizes = [8, 1], strides = [1, 1]} : vector<8x32xf32> to vector<8x1xf32>
    %115 = vector.broadcast %114 : vector<8x1xf32> to vector<8x128xf32>
    %116 = vector.broadcast %107 : vector<1x128xf32> to vector<8x128xf32>
    %117 = arith.subf %115, %116 : vector<8x128xf32>
    %118 = math.absf %117 : vector<8x128xf32>
    %119 = arith.addf %113, %118 : vector<8x128xf32>
    %c4 = arith.constant 4 : index
    %c0_32 = arith.constant 0 : index
    %120 = vector.load %arg5[%c4, %c0_32] : memref<32x128xf32, #tpu.memory_space<vmem>>, vector<1x128xf32>
    %c20 = arith.constant 20 : index
    %c0_33 = arith.constant 0 : index
    %121 = vector.load %arg5[%c20, %c0_33] : memref<32x128xf32, #tpu.memory_space<vmem>>, vector<1x128xf32>
    %122 = vector.extract_strided_slice %62 {offsets = [0, 4], sizes = [8, 1], strides = [1, 1]} : vector<8x32xf32> to vector<8x1xf32>
    %123 = vector.broadcast %122 : vector<8x1xf32> to vector<8x128xf32>
    %124 = vector.broadcast %120 : vector<1x128xf32> to vector<8x128xf32>
    %125 = arith.subf %123, %124 : vector<8x128xf32>
    %126 = math.absf %125 : vector<8x128xf32>
    %127 = arith.addf %119, %126 : vector<8x128xf32>
    %128 = vector.extract_strided_slice %62 {offsets = [0, 20], sizes = [8, 1], strides = [1, 1]} : vector<8x32xf32> to vector<8x1xf32>
    %129 = vector.broadcast %128 : vector<8x1xf32> to vector<8x128xf32>
    %130 = vector.broadcast %121 : vector<1x128xf32> to vector<8x128xf32>
    %131 = arith.subf %129, %130 : vector<8x128xf32>
    %132 = math.absf %131 : vector<8x128xf32>
    %133 = arith.addf %127, %132 : vector<8x128xf32>
    %c5 = arith.constant 5 : index
    %c0_34 = arith.constant 0 : index
    %134 = vector.load %arg5[%c5, %c0_34] : memref<32x128xf32, #tpu.memory_space<vmem>>, vector<1x128xf32>
    %c21 = arith.constant 21 : index
    %c0_35 = arith.constant 0 : index
    %135 = vector.load %arg5[%c21, %c0_35] : memref<32x128xf32, #tpu.memory_space<vmem>>, vector<1x128xf32>
    %136 = vector.extract_strided_slice %62 {offsets = [0, 5], sizes = [8, 1], strides = [1, 1]} : vector<8x32xf32> to vector<8x1xf32>
    %137 = vector.broadcast %136 : vector<8x1xf32> to vector<8x128xf32>
    %138 = vector.broadcast %134 : vector<1x128xf32> to vector<8x128xf32>
    %139 = arith.subf %137, %138 : vector<8x128xf32>
    %140 = math.absf %139 : vector<8x128xf32>
    %141 = arith.addf %133, %140 : vector<8x128xf32>
    %142 = vector.extract_strided_slice %62 {offsets = [0, 21], sizes = [8, 1], strides = [1, 1]} : vector<8x32xf32> to vector<8x1xf32>
    %143 = vector.broadcast %142 : vector<8x1xf32> to vector<8x128xf32>
    %144 = vector.broadcast %135 : vector<1x128xf32> to vector<8x128xf32>
    %145 = arith.subf %143, %144 : vector<8x128xf32>
    %146 = math.absf %145 : vector<8x128xf32>
    %147 = arith.addf %141, %146 : vector<8x128xf32>
    %c6 = arith.constant 6 : index
    %c0_36 = arith.constant 0 : index
    %148 = vector.load %arg5[%c6, %c0_36] : memref<32x128xf32, #tpu.memory_space<vmem>>, vector<1x128xf32>
    %c22 = arith.constant 22 : index
    %c0_37 = arith.constant 0 : index
    %149 = vector.load %arg5[%c22, %c0_37] : memref<32x128xf32, #tpu.memory_space<vmem>>, vector<1x128xf32>
    %150 = vector.extract_strided_slice %62 {offsets = [0, 6], sizes = [8, 1], strides = [1, 1]} : vector<8x32xf32> to vector<8x1xf32>
    %151 = vector.broadcast %150 : vector<8x1xf32> to vector<8x128xf32>
    %152 = vector.broadcast %148 : vector<1x128xf32> to vector<8x128xf32>
    %153 = arith.subf %151, %152 : vector<8x128xf32>
    %154 = math.absf %153 : vector<8x128xf32>
    %155 = arith.addf %147, %154 : vector<8x128xf32>
    %156 = vector.extract_strided_slice %62 {offsets = [0, 22], sizes = [8, 1], strides = [1, 1]} : vector<8x32xf32> to vector<8x1xf32>
    %157 = vector.broadcast %156 : vector<8x1xf32> to vector<8x128xf32>
    %158 = vector.broadcast %149 : vector<1x128xf32> to vector<8x128xf32>
    %159 = arith.subf %157, %158 : vector<8x128xf32>
    %160 = math.absf %159 : vector<8x128xf32>
    %161 = arith.addf %155, %160 : vector<8x128xf32>
    %c7 = arith.constant 7 : index
    %c0_38 = arith.constant 0 : index
    %162 = vector.load %arg5[%c7, %c0_38] : memref<32x128xf32, #tpu.memory_space<vmem>>, vector<1x128xf32>
    %c23 = arith.constant 23 : index
    %c0_39 = arith.constant 0 : index
    %163 = vector.load %arg5[%c23, %c0_39] : memref<32x128xf32, #tpu.memory_space<vmem>>, vector<1x128xf32>
    %164 = vector.extract_strided_slice %62 {offsets = [0, 7], sizes = [8, 1], strides = [1, 1]} : vector<8x32xf32> to vector<8x1xf32>
    %165 = vector.broadcast %164 : vector<8x1xf32> to vector<8x128xf32>
    %166 = vector.broadcast %162 : vector<1x128xf32> to vector<8x128xf32>
    %167 = arith.subf %165, %166 : vector<8x128xf32>
    %168 = math.absf %167 : vector<8x128xf32>
    %169 = arith.addf %161, %168 : vector<8x128xf32>
    %170 = vector.extract_strided_slice %62 {offsets = [0, 23], sizes = [8, 1], strides = [1, 1]} : vector<8x32xf32> to vector<8x1xf32>
    %171 = vector.broadcast %170 : vector<8x1xf32> to vector<8x128xf32>
    %172 = vector.broadcast %163 : vector<1x128xf32> to vector<8x128xf32>
    %173 = arith.subf %171, %172 : vector<8x128xf32>
    %174 = math.absf %173 : vector<8x128xf32>
    %175 = arith.addf %169, %174 : vector<8x128xf32>
    %c8 = arith.constant 8 : index
    %c0_40 = arith.constant 0 : index
    %176 = vector.load %arg5[%c8, %c0_40] : memref<32x128xf32, #tpu.memory_space<vmem>>, vector<1x128xf32>
    %c24 = arith.constant 24 : index
    %c0_41 = arith.constant 0 : index
    %177 = vector.load %arg5[%c24, %c0_41] : memref<32x128xf32, #tpu.memory_space<vmem>>, vector<1x128xf32>
    %178 = vector.extract_strided_slice %62 {offsets = [0, 8], sizes = [8, 1], strides = [1, 1]} : vector<8x32xf32> to vector<8x1xf32>
    %179 = vector.broadcast %178 : vector<8x1xf32> to vector<8x128xf32>
    %180 = vector.broadcast %176 : vector<1x128xf32> to vector<8x128xf32>
    %181 = arith.subf %179, %180 : vector<8x128xf32>
    %182 = math.absf %181 : vector<8x128xf32>
    %183 = arith.addf %175, %182 : vector<8x128xf32>
    %184 = vector.extract_strided_slice %62 {offsets = [0, 24], sizes = [8, 1], strides = [1, 1]} : vector<8x32xf32> to vector<8x1xf32>
    %185 = vector.broadcast %184 : vector<8x1xf32> to vector<8x128xf32>
    %186 = vector.broadcast %177 : vector<1x128xf32> to vector<8x128xf32>
    %187 = arith.subf %185, %186 : vector<8x128xf32>
    %188 = math.absf %187 : vector<8x128xf32>
    %189 = arith.addf %183, %188 : vector<8x128xf32>
    %c9 = arith.constant 9 : index
    %c0_42 = arith.constant 0 : index
    %190 = vector.load %arg5[%c9, %c0_42] : memref<32x128xf32, #tpu.memory_space<vmem>>, vector<1x128xf32>
    %c25 = arith.constant 25 : index
    %c0_43 = arith.constant 0 : index
    %191 = vector.load %arg5[%c25, %c0_43] : memref<32x128xf32, #tpu.memory_space<vmem>>, vector<1x128xf32>
    %192 = vector.extract_strided_slice %62 {offsets = [0, 9], sizes = [8, 1], strides = [1, 1]} : vector<8x32xf32> to vector<8x1xf32>
    %193 = vector.broadcast %192 : vector<8x1xf32> to vector<8x128xf32>
    %194 = vector.broadcast %190 : vector<1x128xf32> to vector<8x128xf32>
    %195 = arith.subf %193, %194 : vector<8x128xf32>
    %196 = math.absf %195 : vector<8x128xf32>
    %197 = arith.addf %189, %196 : vector<8x128xf32>
    %198 = vector.extract_strided_slice %62 {offsets = [0, 25], sizes = [8, 1], strides = [1, 1]} : vector<8x32xf32> to vector<8x1xf32>
    %199 = vector.broadcast %198 : vector<8x1xf32> to vector<8x128xf32>
    %200 = vector.broadcast %191 : vector<1x128xf32> to vector<8x128xf32>
    %201 = arith.subf %199, %200 : vector<8x128xf32>
    %202 = math.absf %201 : vector<8x128xf32>
    %203 = arith.addf %197, %202 : vector<8x128xf32>
    %c10 = arith.constant 10 : index
    %c0_44 = arith.constant 0 : index
    %204 = vector.load %arg5[%c10, %c0_44] : memref<32x128xf32, #tpu.memory_space<vmem>>, vector<1x128xf32>
    %c26 = arith.constant 26 : index
    %c0_45 = arith.constant 0 : index
    %205 = vector.load %arg5[%c26, %c0_45] : memref<32x128xf32, #tpu.memory_space<vmem>>, vector<1x128xf32>
    %206 = vector.extract_strided_slice %62 {offsets = [0, 10], sizes = [8, 1], strides = [1, 1]} : vector<8x32xf32> to vector<8x1xf32>
    %207 = vector.broadcast %206 : vector<8x1xf32> to vector<8x128xf32>
    %208 = vector.broadcast %204 : vector<1x128xf32> to vector<8x128xf32>
    %209 = arith.subf %207, %208 : vector<8x128xf32>
    %210 = math.absf %209 : vector<8x128xf32>
    %211 = arith.addf %203, %210 : vector<8x128xf32>
    %212 = vector.extract_strided_slice %62 {offsets = [0, 26], sizes = [8, 1], strides = [1, 1]} : vector<8x32xf32> to vector<8x1xf32>
    %213 = vector.broadcast %212 : vector<8x1xf32> to vector<8x128xf32>
    %214 = vector.broadcast %205 : vector<1x128xf32> to vector<8x128xf32>
    %215 = arith.subf %213, %214 : vector<8x128xf32>
    %216 = math.absf %215 : vector<8x128xf32>
    %217 = arith.addf %211, %216 : vector<8x128xf32>
    %c11 = arith.constant 11 : index
    %c0_46 = arith.constant 0 : index
    %218 = vector.load %arg5[%c11, %c0_46] : memref<32x128xf32, #tpu.memory_space<vmem>>, vector<1x128xf32>
    %c27 = arith.constant 27 : index
    %c0_47 = arith.constant 0 : index
    %219 = vector.load %arg5[%c27, %c0_47] : memref<32x128xf32, #tpu.memory_space<vmem>>, vector<1x128xf32>
    %220 = vector.extract_strided_slice %62 {offsets = [0, 11], sizes = [8, 1], strides = [1, 1]} : vector<8x32xf32> to vector<8x1xf32>
    %221 = vector.broadcast %220 : vector<8x1xf32> to vector<8x128xf32>
    %222 = vector.broadcast %218 : vector<1x128xf32> to vector<8x128xf32>
    %223 = arith.subf %221, %222 : vector<8x128xf32>
    %224 = math.absf %223 : vector<8x128xf32>
    %225 = arith.addf %217, %224 : vector<8x128xf32>
    %226 = vector.extract_strided_slice %62 {offsets = [0, 27], sizes = [8, 1], strides = [1, 1]} : vector<8x32xf32> to vector<8x1xf32>
    %227 = vector.broadcast %226 : vector<8x1xf32> to vector<8x128xf32>
    %228 = vector.broadcast %219 : vector<1x128xf32> to vector<8x128xf32>
    %229 = arith.subf %227, %228 : vector<8x128xf32>
    %230 = math.absf %229 : vector<8x128xf32>
    %231 = arith.addf %225, %230 : vector<8x128xf32>
    %c12 = arith.constant 12 : index
    %c0_48 = arith.constant 0 : index
    %232 = vector.load %arg5[%c12, %c0_48] : memref<32x128xf32, #tpu.memory_space<vmem>>, vector<1x128xf32>
    %c28 = arith.constant 28 : index
    %c0_49 = arith.constant 0 : index
    %233 = vector.load %arg5[%c28, %c0_49] : memref<32x128xf32, #tpu.memory_space<vmem>>, vector<1x128xf32>
    %234 = vector.extract_strided_slice %62 {offsets = [0, 12], sizes = [8, 1], strides = [1, 1]} : vector<8x32xf32> to vector<8x1xf32>
    %235 = vector.broadcast %234 : vector<8x1xf32> to vector<8x128xf32>
    %236 = vector.broadcast %232 : vector<1x128xf32> to vector<8x128xf32>
    %237 = arith.subf %235, %236 : vector<8x128xf32>
    %238 = math.absf %237 : vector<8x128xf32>
    %239 = arith.addf %231, %238 : vector<8x128xf32>
    %240 = vector.extract_strided_slice %62 {offsets = [0, 28], sizes = [8, 1], strides = [1, 1]} : vector<8x32xf32> to vector<8x1xf32>
    %241 = vector.broadcast %240 : vector<8x1xf32> to vector<8x128xf32>
    %242 = vector.broadcast %233 : vector<1x128xf32> to vector<8x128xf32>
    %243 = arith.subf %241, %242 : vector<8x128xf32>
    %244 = math.absf %243 : vector<8x128xf32>
    %245 = arith.addf %239, %244 : vector<8x128xf32>
    %c13 = arith.constant 13 : index
    %c0_50 = arith.constant 0 : index
    %246 = vector.load %arg5[%c13, %c0_50] : memref<32x128xf32, #tpu.memory_space<vmem>>, vector<1x128xf32>
    %c29 = arith.constant 29 : index
    %c0_51 = arith.constant 0 : index
    %247 = vector.load %arg5[%c29, %c0_51] : memref<32x128xf32, #tpu.memory_space<vmem>>, vector<1x128xf32>
    %248 = vector.extract_strided_slice %62 {offsets = [0, 13], sizes = [8, 1], strides = [1, 1]} : vector<8x32xf32> to vector<8x1xf32>
    %249 = vector.broadcast %248 : vector<8x1xf32> to vector<8x128xf32>
    %250 = vector.broadcast %246 : vector<1x128xf32> to vector<8x128xf32>
    %251 = arith.subf %249, %250 : vector<8x128xf32>
    %252 = math.absf %251 : vector<8x128xf32>
    %253 = arith.addf %245, %252 : vector<8x128xf32>
    %254 = vector.extract_strided_slice %62 {offsets = [0, 29], sizes = [8, 1], strides = [1, 1]} : vector<8x32xf32> to vector<8x1xf32>
    %255 = vector.broadcast %254 : vector<8x1xf32> to vector<8x128xf32>
    %256 = vector.broadcast %247 : vector<1x128xf32> to vector<8x128xf32>
    %257 = arith.subf %255, %256 : vector<8x128xf32>
    %258 = math.absf %257 : vector<8x128xf32>
    %259 = arith.addf %253, %258 : vector<8x128xf32>
    %c14 = arith.constant 14 : index
    %c0_52 = arith.constant 0 : index
    %260 = vector.load %arg5[%c14, %c0_52] : memref<32x128xf32, #tpu.memory_space<vmem>>, vector<1x128xf32>
    %c30 = arith.constant 30 : index
    %c0_53 = arith.constant 0 : index
    %261 = vector.load %arg5[%c30, %c0_53] : memref<32x128xf32, #tpu.memory_space<vmem>>, vector<1x128xf32>
    %262 = vector.extract_strided_slice %62 {offsets = [0, 14], sizes = [8, 1], strides = [1, 1]} : vector<8x32xf32> to vector<8x1xf32>
    %263 = vector.broadcast %262 : vector<8x1xf32> to vector<8x128xf32>
    %264 = vector.broadcast %260 : vector<1x128xf32> to vector<8x128xf32>
    %265 = arith.subf %263, %264 : vector<8x128xf32>
    %266 = math.absf %265 : vector<8x128xf32>
    %267 = arith.addf %259, %266 : vector<8x128xf32>
    %268 = vector.extract_strided_slice %62 {offsets = [0, 30], sizes = [8, 1], strides = [1, 1]} : vector<8x32xf32> to vector<8x1xf32>
    %269 = vector.broadcast %268 : vector<8x1xf32> to vector<8x128xf32>
    %270 = vector.broadcast %261 : vector<1x128xf32> to vector<8x128xf32>
    %271 = arith.subf %269, %270 : vector<8x128xf32>
    %272 = math.absf %271 : vector<8x128xf32>
    %273 = arith.addf %267, %272 : vector<8x128xf32>
    %c15 = arith.constant 15 : index
    %c0_54 = arith.constant 0 : index
    %274 = vector.load %arg5[%c15, %c0_54] : memref<32x128xf32, #tpu.memory_space<vmem>>, vector<1x128xf32>
    %c31 = arith.constant 31 : index
    %c0_55 = arith.constant 0 : index
    %275 = vector.load %arg5[%c31, %c0_55] : memref<32x128xf32, #tpu.memory_space<vmem>>, vector<1x128xf32>
    %276 = vector.extract_strided_slice %62 {offsets = [0, 15], sizes = [8, 1], strides = [1, 1]} : vector<8x32xf32> to vector<8x1xf32>
    %277 = vector.broadcast %276 : vector<8x1xf32> to vector<8x128xf32>
    %278 = vector.broadcast %274 : vector<1x128xf32> to vector<8x128xf32>
    %279 = arith.subf %277, %278 : vector<8x128xf32>
    %280 = math.absf %279 : vector<8x128xf32>
    %281 = arith.addf %273, %280 : vector<8x128xf32>
    %282 = vector.extract_strided_slice %62 {offsets = [0, 31], sizes = [8, 1], strides = [1, 1]} : vector<8x32xf32> to vector<8x1xf32>
    %283 = vector.broadcast %282 : vector<8x1xf32> to vector<8x128xf32>
    %284 = vector.broadcast %275 : vector<1x128xf32> to vector<8x128xf32>
    %285 = arith.subf %283, %284 : vector<8x128xf32>
    %286 = math.absf %285 : vector<8x128xf32>
    %287 = arith.addf %281, %286 : vector<8x128xf32>
    %288 = arith.index_cast %60 : i32 to index
    %c0_56 = arith.constant 0 : index
    %289 = vector.load %arg6[%288, %c0_56] : memref<8x128xf32, #tpu.memory_space<vmem>>, vector<8x128xf32>
    %cst_57 = arith.constant 1.000000e+00 : f32
    %290 = vector.broadcast %cst_57 : f32 to vector<8x128xf32>
    %291 = arith.mulf %290, %287 : vector<8x128xf32>
    %292 = arith.addf %289, %291 : vector<8x128xf32>
    %293 = arith.index_cast %60 : i32 to index
    %c0_58 = arith.constant 0 : index
    %294 = vector.load %arg6[%293, %c0_58] : memref<8x128xf32, #tpu.memory_space<vmem>>, vector<8x128xf32>
    tpu.vector_store %arg6[%293, %c0_58], %292 {strides = array<i32>} : memref<8x128xf32, #tpu.memory_space<vmem>>, vector<8x128xf32>,
    %c1_i32 = arith.constant 1 : i32
    return
  }
  func.func @transform_0(%arg0: i32, %arg1: i32) -> (i32, i32) {
    %c0_i32 = arith.constant 0 : i32
    %c0_i32_0 = arith.constant 0 : i32
    return %arg0, %c0_i32 : i32, i32
  }
  func.func @transform_1(%arg0: i32, %arg1: i32) -> (i32, i32) {
    %c0_i32 = arith.constant 0 : i32
    %c0_i32_0 = arith.constant 0 : i32
    return %c0_i32, %arg1 : i32, i32
  }
  func.func @transform_2(%arg0: i32, %arg1: i32) -> (i32, i32) {
    %c0_i32 = arith.constant 0 : i32
    %c0_i32_0 = arith.constant 0 : i32
    return %arg0, %c0_i32 : i32, i32
  }
  func.func @transform_3(%arg0: i32, %arg1: i32) -> (i32, i32) {
    %c0_i32 = arith.constant 0 : i32
    %c0_i32_0 = arith.constant 0 : i32
    return %c0_i32, %arg1 : i32, i32
  }
  func.func @transform_4(%arg0: i32, %arg1: i32) -> (i32, i32) {
    %c0_i32 = arith.constant 0 : i32
    return %arg0, %arg1 : i32, i32
  }
}

</mosaic_0001>

<llo_original>
// kernel: matcher_cost_matrix.1
$region0: #{matcher_cost_matrix.1}
  #allocation0 [shape = 'u32[]', space=smem, size = 0x4, offset = 0x4, fixed_abs, tag = 'smem constant byte address 0x4 - core index']
  #allocation1 [shape = 'u32[144,128]{1,0:T(1,128)}', space=vmem, size = 0x12000, scoped, tag = 'internal scratch']
  %s0 = inlined_call_operand.vmem [shape: f32[16,4], index: 0, kind: input, shape index: {}]
  %s1 = inlined_call_operand.vmem [shape: f32[4,128], index: 1, kind: input, shape index: {}]
  %s2 = inlined_call_operand.vmem [shape: f32[16,32], index: 2, kind: input, shape index: {}]
  %s3 = inlined_call_operand.vmem [shape: f32[32,128], index: 3, kind: input, shape index: {}]
  %s4 = inlined_call_operand.vmem [shape: f32[16,128], index: 4, kind: output, shape index: {}]
  %s5 = sld [smem:[#allocation0]]
  $region49: #{matcher_cost_matrix.1} parent=0
    _
  %s7 = ssub.s32 1, %s5
  %s8 = scalar_select 0, %s7, %s5
  loop: start=0, step=1, limit=4
  $region2: #{matcher_cost_matrix.1} parent=0 // loop_pre_header
    _
  $region3: #{matcher_cost_matrix.1} parent=0 // loop_header
    %s10 = sphi 0, %s14
    %p11 = scmp.ge.s32.totalorder %s10, 4
    %s17 = sphi 0, %s29
    %s18 = sphi 0, %s25
    %s19 = sphi 0, %s17
    %s20 = sphi 0, %s18
    %s21 = sphi 0, %s19
    %s22 = sphi 0, %s20
    %s32 = sphi 0, %s34
    %s35 = sphi 0, %s32
    %s36 = sphi 0, %s35
    %s52 = sphi 0, %s36
    %s58 = sphi 0, %s60
    %s61 = sphi 0, %s58
    %s62 = sphi 0, %s61
    %s78 = sphi 0, %s62
    %s84 = sphi 0, %s86
    %s87 = sphi 0, %s84
    %s88 = sphi 0, %s87
    %s104 = sphi 0, %s88
    %s110 = sphi 0, %s112
    %s113 = sphi 0, %s110
    %s114 = sphi 0, %s113
    %s130 = sphi 0, %s114
    %s138 = sphi 0, %s140
    %s141 = sphi 0, %s138
    %s142 = sphi 0, %s141
    %s158 = sphi 0, %s142
  $region4: #{matcher_cost_matrix.1} parent=0 // loop_header_branch
    %13 = sbr.rel (%p11) target = $region8
  $region5: #{matcher_cost_matrix.1} parent=0 // loop_body
    %s15 = ssub.s32 %s10, 1
    %s16 = ssub.s32 %s10, 2
    %s23 = sadd.s32 1, %s18
    %p24 = scmp.ge.s32.totalorder %s23, 1
    %s25 = scalar_select %p24, 0, %s23
    %s26 = sadd.s32 1, %s17
    %s27 = scalar_select %p24, %s26, %s17
    %p28 = scmp.ge.s32.totalorder %s27, 2
    %s29 = scalar_select %p28, 0, %s27
    %s30 = ssub.s32 %s17, %s29
    %p31 = scmp.eq.s32.totalorder %s30, 0
    %s33 = sadd.s32 %s32, 1
    %s34 = scalar_select %p31, %s32, %s33
    %p37 = pneg %p31
    %p38 = scmp.eq.s32.totalorder %s10, 1
    %p39 = por %p37, %p38
    %p40 = scmp.ne.s32.totalorder %s32, %s35
    %p41 = scmp.eq.s32.totalorder %s10, 0
    %p42 = por %p40, %p41
    %p43 = scmp.ne.s32.totalorder %s32, %s35
    %p44 = scmp.eq.s32.totalorder %s15, 1
    %p45 = por %p43, %p44
    %p46 = scmp.ne.s32.totalorder %s35, %s36
    %p47 = scmp.eq.s32.totalorder %s15, 0
    %p48 = por %p46, %p47
    %p49 = scmp.ne.s32.totalorder %s35, %s36
    %p50 = scmp.eq.s32.totalorder %s16, 1
    %p51 = por %p49, %p50
    %p53 = scmp.ne.s32.totalorder %s36, %s52
    %p54 = scmp.eq.s32.totalorder %s16, 0
    %p55 = por %p53, %p54
    %s56 = ssub.s32 %s18, %s25
    %p57 = scmp.eq.s32.totalorder %s56, 0
    %s59 = sadd.s32 %s58, 1
    %s60 = scalar_select %p57, %s58, %s59
    %p63 = pneg %p57
    %p64 = scmp.eq.s32.totalorder %s10, 1
    %p65 = por %p63, %p64
    %p66 = scmp.ne.s32.totalorder %s58, %s61
    %p67 = scmp.eq.s32.totalorder %s10, 0
    %p68 = por %p66, %p67
    %p69 = scmp.ne.s32.totalorder %s58, %s61
    %p70 = scmp.eq.s32.totalorder %s15, 1
    %p71 = por %p69, %p70
    %p72 = scmp.ne.s32.totalorder %s61, %s62
    %p73 = scmp.eq.s32.totalorder %s15, 0
    %p74 = por %p72, %p73
    %p75 = scmp.ne.s32.totalorder %s61, %s62
    %p76 = scmp.eq.s32.totalorder %s16, 1
    %p77 = por %p75, %p76
    %p79 = scmp.ne.s32.totalorder %s62, %s78
    %p80 = scmp.eq.s32.totalorder %s16, 0
    %p81 = por %p79, %p80
    %s82 = ssub.s32 %s17, %s29
    %p83 = scmp.eq.s32.totalorder %s82, 0
    %s85 = sadd.s32 %s84, 1
    %s86 = scalar_select %p83, %s84, %s85
    %p89 = pneg %p83
    %p90 = scmp.eq.s32.totalorder %s10, 1
    %p91 = por %p89, %p90
    %p92 = scmp.ne.s32.totalorder %s84, %s87
    %p93 = scmp.eq.s32.totalorder %s10, 0
    %p94 = por %p92, %p93
    %p95 = scmp.ne.s32.totalorder %s84, %s87
    %p96 = scmp.eq.s32.totalorder %s15, 1
    %p97 = por %p95, %p96
    %p98 = scmp.ne.s32.totalorder %s87, %s88
    %p99 = scmp.eq.s32.totalorder %s15, 0
    %p100 = por %p98, %p99
    %p101 = scmp.ne.s32.totalorder %s87, %s88
    %p102 = scmp.eq.s32.totalorder %s16, 1
    %p103 = por %p101, %p102
    %p105 = scmp.ne.s32.totalorder %s88, %s104
    %p106 = scmp.eq.s32.totalorder %s16, 0
    %p107 = por %p105, %p106
    %s108 = ssub.s32 %s18, %s25
    %p109 = scmp.eq.s32.totalorder %s108, 0
    %s111 = sadd.s32 %s110, 1
    %s112 = scalar_select %p109, %s110, %s111
    %p115 = pneg %p109
    %p116 = scmp.eq.s32.totalorder %s10, 1
    %p117 = por %p115, %p116
    %p118 = scmp.ne.s32.totalorder %s110, %s113
    %p119 = scmp.eq.s32.totalorder %s10, 0
    %p120 = por %p118, %p119
    %p121 = scmp.ne.s32.totalorder %s110, %s113
    %p122 = scmp.eq.s32.totalorder %s15, 1
    %p123 = por %p121, %p122
    %p124 = scmp.ne.s32.totalorder %s113, %s114
    %p125 = scmp.eq.s32.totalorder %s15, 0
    %p126 = por %p124, %p125
    %p127 = scmp.ne.s32.totalorder %s113, %s114
    %p128 = scmp.eq.s32.totalorder %s16, 1
    %p129 = por %p127, %p128
    %p131 = scmp.ne.s32.totalorder %s114, %s130
    %p132 = scmp.eq.s32.totalorder %s16, 0
    %p133 = por %p131, %p132
    %s134 = ssub.s32 %s17, %s29
    %s135 = ssub.s32 %s18, %s25
    %s136 = sor.u32 %s134, %s135
    %p137 = scmp.eq.s32.totalorder %s136, 0
    %s139 = sadd.s32 %s138, 1
    %s140 = scalar_select %p137, %s138, %s139
    %p143 = pneg %p137
    %p144 = scmp.eq.s32.totalorder %s10, 1
    %p145 = por %p143, %p144
    %p146 = scmp.ne.s32.totalorder %s138, %s141
    %p147 = scmp.eq.s32.totalorder %s10, 0
    %p148 = por %p146, %p147
    %p149 = scmp.ne.s32.totalorder %s138, %s141
    %p150 = scmp.eq.s32.totalorder %s15, 1
    %p151 = por %p149, %p150
    %p152 = scmp.ne.s32.totalorder %s141, %s142
    %p153 = scmp.eq.s32.totalorder %s15, 0
    %p154 = por %p152, %p153
    %p155 = scmp.ne.s32.totalorder %s141, %s142
    %p156 = scmp.eq.s32.totalorder %s16, 1
    %p157 = por %p155, %p156
    %p159 = scmp.ne.s32.totalorder %s142, %s158
    %p160 = scmp.eq.s32.totalorder %s16, 0
    %p161 = por %p159, %p160
    %p162 = scmp.le.s32.totalorder 1, %s10
    %p163 = scmp.lt.s32.totalorder %s10, 3
    %p164 = pnand %p162, %p163
    %p165 = pneg %p164
    // Predicated region
    $region9: #{matcher_cost_matrix.1} parent=5 // pred_check
      _
    $region10: #{matcher_cost_matrix.1} parent=5 // pred_check_branch
      %167 = sbr.rel (%p164) target = $region12
    $region11: #{matcher_cost_matrix.1} parent=5 // pred_region
      %s168 = ssub.s32 %s10, 1
      // Predicated region
      $region13: #{matcher_cost_matrix.1} parent=11 // pred_check
        %p169 = pneg %p74
      $region14: #{matcher_cost_matrix.1} parent=11 // pred_check_branch
        %171 = sbr.rel (%p169) target = $region16
      $region15: #{matcher_cost_matrix.1} parent=11 // pred_region
        %p172 = scmp.lt.s32.totalorder %s20, 0
        %s173 = scalar_select %p172, %s20, 0
        %s174 = smul.addr %s173, 4
        %s175 = scalar_lea.vmem %s1, %s174
      $region16: #{matcher_cost_matrix.1} parent=11 // pred_fallthru
        _
      // Predicated region
      $region17: #{matcher_cost_matrix.1} parent=11 // pred_check
        %p176 = pneg %p126
      $region18: #{matcher_cost_matrix.1} parent=11 // pred_check_branch
        %178 = sbr.rel (%p176) target = $region20
      $region19: #{matcher_cost_matrix.1} parent=11 // pred_region
        %p179 = scmp.lt.s32.totalorder %s20, 0
        %s180 = scalar_select %p179, %s20, 0
        %s181 = smul.addr %s180, 8
        %s182 = scalar_lea.vmem %s3, %s181
      $region20: #{matcher_cost_matrix.1} parent=11 // pred_fallthru
        _
    $region12: #{matcher_cost_matrix.1} parent=5 // pred_fallthru
      _
    %p183 = scmp.lt.s32.totalorder %s10, 2
    // Predicated region
    $region21: #{matcher_cost_matrix.1} parent=5 // pred_check
      %p184 = pneg %p183
    $region22: #{matcher_cost_matrix.1} parent=5 // pred_check_branch
      %186 = sbr.rel (%p184) target = $region24
    $region23: #{matcher_cost_matrix.1} parent=5 // pred_region
      // Predicated region
      $region25: #{matcher_cost_matrix.1} parent=23 // pred_check
        %p187 = pneg %p42
      $region26: #{matcher_cost_matrix.1} parent=23 // pred_check_branch
        %189 = sbr.rel (%p187) target = $region28
      $region27: #{matcher_cost_matrix.1} parent=23 // pred_region
        %p190 = scmp.lt.s32.totalorder %s17, 1
        %s191 = scalar_select %p190, %s17, 1
        %s192 = smul.addr %s191, 8
        %s193 = scalar_lea.vmem %s0, %s192
      $region28: #{matcher_cost_matrix.1} parent=23 // pred_fallthru
        _
      // Predicated region
      $region29: #{matcher_cost_matrix.1} parent=23 // pred_check
        %p194 = pneg %p94
      $region30: #{matcher_cost_matrix.1} parent=23 // pred_check_branch
        %196 = sbr.rel (%p194) target = $region32
      $region31: #{matcher_cost_matrix.1} parent=23 // pred_region
        %p197 = scmp.lt.s32.totalorder %s17, 1
        %s198 = scalar_select %p197, %s17, 1
        %s199 = smul.addr %s198, 8
        %s200 = scalar_lea.vmem %s2, %s199
      $region32: #{matcher_cost_matrix.1} parent=23 // pred_fallthru
        _
    $region24: #{matcher_cost_matrix.1} parent=5 // pred_fallthru
      _
    %p201 = scmp.le.s32.totalorder 1, %s10
    %p202 = scmp.lt.s32.totalorder %s10, 3
    %p203 = pnand %p201, %p202
    %p204 = pneg %p203
    // Predicated region
    $region33: #{matcher_cost_matrix.1} parent=5 // pred_check
      _
    $region34: #{matcher_cost_matrix.1} parent=5 // pred_check_branch
      %206 = sbr.rel (%p203) target = $region36
    $region35: #{matcher_cost_matrix.1} parent=5 // pred_region
      %s207 = ssub.s32 %s10, 1
      %p208 = scmp.lt.s32.totalorder %s19, 1
      %s209 = scalar_select %p208, %s19, 1
      %s210 = smul.addr %s209, 8
      %s211 = scalar_lea.vmem %s0, %s210
      %p212 = pneg %p48
      %p213 = pneg %p45
      %p214 = scmp.lt.s32.totalorder %s20, 0
      %s215 = scalar_select %p214, %s20, 0
      %s216 = smul.addr %s215, 4
      %s217 = scalar_lea.vmem %s1, %s216
      %p218 = pneg %p74
      %p219 = pneg %p71
      %p220 = scmp.lt.s32.totalorder %s19, 1
      %s221 = scalar_select %p220, %s19, 1
      %s222 = smul.addr %s221, 8
      %s223 = scalar_lea.vmem %s2, %s222
      %p224 = pneg %p100
      %p225 = pneg %p97
      %p226 = scmp.lt.s32.totalorder %s20, 0
      %s227 = scalar_select %p226, %s20, 0
      %s228 = smul.addr %s227, 8
      %s229 = scalar_lea.vmem %s3, %s228
      %p230 = pneg %p126
      %p231 = pneg %p123
      %p232 = pneg %p154
      %p233 = pneg %p151
      %p234 = scmp.lt.s32.totalorder %s19, 1
      %s235 = scalar_select %p234, %s19, 1
      %p236 = scmp.lt.s32.totalorder %s20, 0
      %s237 = scalar_select %p236, %s20, 0
      %s238 = sadd.s32 %s237, %s235
      %s239 = smul.addr %s238, 8
      %s240 = scalar_lea.vmem %s4, %s239
      %p241 = scmp.lt.s32.totalorder %s19, 1
      %s242 = scalar_select %p241, %s19, 1
      %s243 = smul.addr %s242, 8
      %s244 = scalar_lea.vmem %s0, %s243
      %p245 = scmp.lt.s32.totalorder %s20, 0
      %s246 = scalar_select %p245, %s20, 0
      %s247 = smul.addr %s246, 4
      %s248 = scalar_lea.vmem %s1, %s247
      %p249 = scmp.lt.s32.totalorder %s19, 1
      %s250 = scalar_select %p249, %s19, 1
      %s251 = smul.addr %s250, 8
      %s252 = scalar_lea.vmem %s2, %s251
      %p253 = scmp.lt.s32.totalorder %s20, 0
      %s254 = scalar_select %p253, %s20, 0
      %s255 = smul.addr %s254, 8
      %s256 = scalar_lea.vmem %s3, %s255
      %p257 = scmp.lt.s32.totalorder %s19, 1
      %s258 = scalar_select %p257, %s19, 1
      %p259 = scmp.lt.s32.totalorder %s20, 0
      %s260 = scalar_select %p259, %s20, 0
      %s261 = sadd.s32 %s260, %s258
      %s262 = smul.addr %s261, 8
      %s263 = scalar_lea.vmem %s4, %s262
      %v264 = vld [vmem:[%s244] sm:$0xff]
      %v265 = vand.u32 2147483647, %v264
      %v266 = vsub.f32 0.0, %v265
      %v267 = vmul.f32 %v266, 1.442695
      %v268 = vpow.pop %v267
      %v269 = vadd.f32 %v268, 1.0
      %v270 = vrcp.pop %v269
      %v271 = vmul.f32 1.0, %v270
      %vm272 = vcmp.ge.f32.partialorder %v264, 0.0
      %v273 = vmul.f32 %v268, %v271
      %v274 = vsel %vm272, %v271, %v273
      %v275 = vmax.f32 %v264, 0.0
      %v276 = vlog2.pop %v269
      %v277 = vmul.f32 %v276, 0.6931472
      %v278 = vadd.f32 %v275, %v277
      %v279 = vsub.f32 %v278, %v264
      %v280 = vsub.f32 1.0, %v274
      %v281 = vmul.f32 %v280, %v280
      %v282 = vmul.f32 %v281, 0.25
      %v283 = vmul.f32 %v282, %v279
      %v284 = vmul.f32 %v274, %v274
      %v285 = vmul.f32 %v284, 0.75
      %v286 = vmul.f32 %v285, %v278
      %v287 = vsub.f32 %v283, %v286
      %v288 = vld [vmem:[%s248] sm:$0x1]
      %290 = vset.pattern.permute.xlu0 0
      %291 = vperm.xlu0 %290, %v287
      %v292 = vpop.permute.xlu0 %291
      %v294 = vlaneseq
      %v295 = vshrl.u32 %v294, 7
      %v296 = vsub.s32 0, %v295
      %v297 = vrot.slane %v288, %v296
      %v298 = vmul.f32 %v292, %v297
      %v299 = vadd.f32 %v298, 0.0
      %v300 = vld [vmem:[%s248 + $0x1] sm:$0x1]
      %301 = vset.pattern.permute.xlu0 1
      %302 = vperm.xlu0 %301, %v287
      %v303 = vpop.permute.xlu0 %302
      %v305 = vlaneseq
      %v306 = vshrl.u32 %v305, 7
      %v307 = vsub.s32 0, %v306
      %v308 = vrot.slane %v300, %v307
      %v309 = vmul.f32 %v303, %v308
      %v310 = vadd.f32 %v299, %v309
      %v311 = vld [vmem:[%s248 + $0x2] sm:$0x1]
      %312 = vset.pattern.permute.xlu0 2
      %313 = vperm.xlu0 %312, %v287
      %v314 = vpop.permute.xlu0 %313
      %v316 = vlaneseq
      %v317 = vshrl.u32 %v316, 7
      %v318 = vsub.s32 0, %v317
      %v319 = vrot.slane %v311, %v318
      %v320 = vmul.f32 %v314, %v319
      %v321 = vadd.f32 %v310, %v320
      %v322 = vld [vmem:[%s248 + $0x3] sm:$0x1]
      %323 = vset.pattern.permute.xlu0 3
      %324 = vperm.xlu0 %323, %v287
      %v325 = vpop.permute.xlu0 %324
      %v327 = vlaneseq
      %v328 = vshrl.u32 %v327, 7
      %v329 = vsub.s32 0, %v328
      %v330 = vrot.slane %v322, %v329
      %v331 = vmul.f32 %v325, %v330
      %v332 = vadd.f32 %v321, %v331
      %333 = vst [vmem:[%s263] sm:$0xff] %v332
      %v334 = vld [vmem:[%s252] sm:$0xff]
      %v335 = vld [vmem:[%s256] sm:$0x1]
      %v336 = vld [vmem:[%s256 + $0x10] sm:$0x1]
      %338 = vset.pattern.permute.xlu0 0
      %339 = vperm.xlu0 %338, %v334
      %v340 = vpop.permute.xlu0 %339
      %v342 = vlaneseq
      %v343 = vshrl.u32 %v342, 7
      %v344 = vsub.s32 0, %v343
      %v345 = vrot.slane %v335, %v344
      %v346 = vsub.f32 %v340, %v345
      %v347 = vand.u32 2147483647, %v346
      %v348 = vadd.f32 %v347, 0.0
      %349 = vset.pattern.permute.xlu0 16
      %350 = vperm.xlu0 %349, %v334
      %v351 = vpop.permute.xlu0 %350
      %v353 = vlaneseq
      %v354 = vshrl.u32 %v353, 7
      %v355 = vsub.s32 0, %v354
      %v356 = vrot.slane %v336, %v355
      %v357 = vsub.f32 %v351, %v356
      %v358 = vand.u32 2147483647, %v357
      %v359 = vadd.f32 %v348, %v358
      %v360 = vld [vmem:[%s256 + $0x1] sm:$0x1]
      %v361 = vld [vmem:[%s256 + $0x11] sm:$0x1]
      %362 = vset.pattern.permute.xlu0 1
      %363 = vperm.xlu0 %362, %v334
      %v364 = vpop.permute.xlu0 %363
      %v366 = vlaneseq
      %v367 = vshrl.u32 %v366, 7
      %v368 = vsub.s32 0, %v367
      %v369 = vrot.slane %v360, %v368
      %v370 = vsub.f32 %v364, %v369
      %v371 = vand.u32 2147483647, %v370
      %v372 = vadd.f32 %v359, %v371
      %373 = vset.pattern.permute.xlu0 17
      %374 = vperm.xlu0 %373, %v334
      %v375 = vpop.permute.xlu0 %374
      %v377 = vlaneseq
      %v378 = vshrl.u32 %v377, 7
      %v379 = vsub.s32 0, %v378
      %v380 = vrot.slane %v361, %v379
      %v381 = vsub.f32 %v375, %v380
      %v382 = vand.u32 2147483647, %v381
      %v383 = vadd.f32 %v372, %v382
      %v384 = vld [vmem:[%s256 + $0x2] sm:$0x1]
      %v385 = vld [vmem:[%s256 + $0x12] sm:$0x1]
      %386 = vset.pattern.permute.xlu0 2
      %387 = vperm.xlu0 %386, %v334
      %v388 = vpop.permute.xlu0 %387
      %v390 = vlaneseq
      %v391 = vshrl.u32 %v390, 7
      %v392 = vsub.s32 0, %v391
      %v393 = vrot.slane %v384, %v392
      %v394 = vsub.f32 %v388, %v393
      %v395 = vand.u32 2147483647, %v394
      %v396 = vadd.f32 %v383, %v395
      %397 = vset.pattern.permute.xlu0 18
      %398 = vperm.xlu0 %397, %v334
      %v399 = vpop.permute.xlu0 %398
      %v401 = vlaneseq
      %v402 = vshrl.u32 %v401, 7
      %v403 = vsub.s32 0, %v402
      %v404 = vrot.slane %v385, %v403
      %v405 = vsub.f32 %v399, %v404
      %v406 = vand.u32 2147483647, %v405
      %v407 = vadd.f32 %v396, %v406
      %v408 = vld [vmem:[%s256 + $0x3] sm:$0x1]
      %v409 = vld [vmem:[%s256 + $0x13] sm:$0x1]
      %410 = vset.pattern.permute.xlu0 3
      %411 = vperm.xlu0 %410, %v334
      %v412 = vpop.permute.xlu0 %411
      %v414 = vlaneseq
      %v415 = vshrl.u32 %v414, 7
      %v416 = vsub.s32 0, %v415
      %v417 = vrot.slane %v408, %v416
      %v418 = vsub.f32 %v412, %v417
      %v419 = vand.u32 2147483647, %v418
      %v420 = vadd.f32 %v407, %v419
      %421 = vset.pattern.permute.xlu0 19
      %422 = vperm.xlu0 %421, %v334
      %v423 = vpop.permute.xlu0 %422
      %v425 = vlaneseq
      %v426 = vshrl.u32 %v425, 7
      %v427 = vsub.s32 0, %v426
      %v428 = vrot.slane %v409, %v427
      %v429 = vsub.f32 %v423, %v428
      %v430 = vand.u32 2147483647, %v429
      %v431 = vadd.f32 %v420, %v430
      %v432 = vld [vmem:[%s256 + $0x4] sm:$0x1]
      %v433 = vld [vmem:[%s256 + $0x14] sm:$0x1]
      %434 = vset.pattern.permute.xlu0 4
      %435 = vperm.xlu0 %434, %v334
      %v436 = vpop.permute.xlu0 %435
      %v438 = vlaneseq
      %v439 = vshrl.u32 %v438, 7
      %v440 = vsub.s32 0, %v439
      %v441 = vrot.slane %v432, %v440
      %v442 = vsub.f32 %v436, %v441
      %v443 = vand.u32 2147483647, %v442
      %v444 = vadd.f32 %v431, %v443
      %445 = vset.pattern.permute.xlu0 20
      %446 = vperm.xlu0 %445, %v334
      %v447 = vpop.permute.xlu0 %446
      %v449 = vlaneseq
      %v450 = vshrl.u32 %v449, 7
      %v451 = vsub.s32 0, %v450
      %v452 = vrot.slane %v433, %v451
      %v453 = vsub.f32 %v447, %v452
      %v454 = vand.u32 2147483647, %v453
      %v455 = vadd.f32 %v444, %v454
      %v456 = vld [vmem:[%s256 + $0x5] sm:$0x1]
      %v457 = vld [vmem:[%s256 + $0x15] sm:$0x1]
      %458 = vset.pattern.permute.xlu0 5
      %459 = vperm.xlu0 %458, %v334
      %v460 = vpop.permute.xlu0 %459
      %v462 = vlaneseq
      %v463 = vshrl.u32 %v462, 7
      %v464 = vsub.s32 0, %v463
      %v465 = vrot.slane %v456, %v464
      %v466 = vsub.f32 %v460, %v465
      %v467 = vand.u32 2147483647, %v466
      %v468 = vadd.f32 %v455, %v467
      %469 = vset.pattern.permute.xlu0 21
      %470 = vperm.xlu0 %469, %v334
      %v471 = vpop.permute.xlu0 %470
      %v473 = vlaneseq
      %v474 = vshrl.u32 %v473, 7
      %v475 = vsub.s32 0, %v474
      %v476 = vrot.slane %v457, %v475
      %v477 = vsub.f32 %v471, %v476
      %v478 = vand.u32 2147483647, %v477
      %v479 = vadd.f32 %v468, %v478
      %v480 = vld [vmem:[%s256 + $0x6] sm:$0x1]
      %v481 = vld [vmem:[%s256 + $0x16] sm:$0x1]
      %482 = vset.pattern.permute.xlu0 6
      %483 = vperm.xlu0 %482, %v334
      %v484 = vpop.permute.xlu0 %483
      %v486 = vlaneseq
      %v487 = vshrl.u32 %v486, 7
      %v488 = vsub.s32 0, %v487
      %v489 = vrot.slane %v480, %v488
      %v490 = vsub.f32 %v484, %v489
      %v491 = vand.u32 2147483647, %v490
      %v492 = vadd.f32 %v479, %v491
      %493 = vset.pattern.permute.xlu0 22
      %494 = vperm.xlu0 %493, %v334
      %v495 = vpop.permute.xlu0 %494
      %v497 = vlaneseq
      %v498 = vshrl.u32 %v497, 7
      %v499 = vsub.s32 0, %v498
      %v500 = vrot.slane %v481, %v499
      %v501 = vsub.f32 %v495, %v500
      %v502 = vand.u32 2147483647, %v501
      %v503 = vadd.f32 %v492, %v502
      %v504 = vld [vmem:[%s256 + $0x7] sm:$0x1]
      %v505 = vld [vmem:[%s256 + $0x17] sm:$0x1]
      %506 = vset.pattern.permute.xlu0 7
      %507 = vperm.xlu0 %506, %v334
      %v508 = vpop.permute.xlu0 %507
      %v510 = vlaneseq
      %v511 = vshrl.u32 %v510, 7
      %v512 = vsub.s32 0, %v511
      %v513 = vrot.slane %v504, %v512
      %v514 = vsub.f32 %v508, %v513
      %v515 = vand.u32 2147483647, %v514
      %v516 = vadd.f32 %v503, %v515
      %517 = vset.pattern.permute.xlu0 23
      %518 = vperm.xlu0 %517, %v334
      %v519 = vpop.permute.xlu0 %518
      %v521 = vlaneseq
      %v522 = vshrl.u32 %v521, 7
      %v523 = vsub.s32 0, %v522
      %v524 = vrot.slane %v505, %v523
      %v525 = vsub.f32 %v519, %v524
      %v526 = vand.u32 2147483647, %v525
      %v527 = vadd.f32 %v516, %v526
      %v528 = vld [vmem:[%s256 + $0x8] sm:$0x1]
      %v529 = vld [vmem:[%s256 + $0x18] sm:$0x1]
      %530 = vset.pattern.permute.xlu0 8
      %531 = vperm.xlu0 %530, %v334
      %v532 = vpop.permute.xlu0 %531
      %v534 = vlaneseq
      %v535 = vshrl.u32 %v534, 7
      %v536 = vsub.s32 0, %v535
      %v537 = vrot.slane %v528, %v536
      %v538 = vsub.f32 %v532, %v537
      %v539 = vand.u32 2147483647, %v538
      %v540 = vadd.f32 %v527, %v539
      %541 = vset.pattern.permute.xlu0 24
      %542 = vperm.xlu0 %541, %v334
      %v543 = vpop.permute.xlu0 %542
      %v545 = vlaneseq
      %v546 = vshrl.u32 %v545, 7
      %v547 = vsub.s32 0, %v546
      %v548 = vrot.slane %v529, %v547
      %v549 = vsub.f32 %v543, %v548
      %v550 = vand.u32 2147483647, %v549
      %v551 = vadd.f32 %v540, %v550
      %v552 = vld [vmem:[%s256 + $0x9] sm:$0x1]
      %v553 = vld [vmem:[%s256 + $0x19] sm:$0x1]
      %554 = vset.pattern.permute.xlu0 9
      %555 = vperm.xlu0 %554, %v334
      %v556 = vpop.permute.xlu0 %555
      %v558 = vlaneseq
      %v559 = vshrl.u32 %v558, 7
      %v560 = vsub.s32 0, %v559
      %v561 = vrot.slane %v552, %v560
      %v562 = vsub.f32 %v556, %v561
      %v563 = vand.u32 2147483647, %v562
      %v564 = vadd.f32 %v551, %v563
      %565 = vset.pattern.permute.xlu0 25
      %566 = vperm.xlu0 %565, %v334
      %v567 = vpop.permute.xlu0 %566
      %v569 = vlaneseq
      %v570 = vshrl.u32 %v569, 7
      %v571 = vsub.s32 0, %v570
      %v572 = vrot.slane %v553, %v571
      %v573 = vsub.f32 %v567, %v572
      %v574 = vand.u32 2147483647, %v573
      %v575 = vadd.f32 %v564, %v574
      %v576 = vld [vmem:[%s256 + $0xa] sm:$0x1]
      %v577 = vld [vmem:[%s256 + $0x1a] sm:$0x1]
      %578 = vset.pattern.permute.xlu0 10
      %579 = vperm.xlu0 %578, %v334
      %v580 = vpop.permute.xlu0 %579
      %v582 = vlaneseq
      %v583 = vshrl.u32 %v582, 7
      %v584 = vsub.s32 0, %v583
      %v585 = vrot.slane %v576, %v584
      %v586 = vsub.f32 %v580, %v585
      %v587 = vand.u32 2147483647, %v586
      %v588 = vadd.f32 %v575, %v587
      %589 = vset.pattern.permute.xlu0 26
      %590 = vperm.xlu0 %589, %v334
      %v591 = vpop.permute.xlu0 %590
      %v593 = vlaneseq
      %v594 = vshrl.u32 %v593, 7
      %v595 = vsub.s32 0, %v594
      %v596 = vrot.slane %v577, %v595
      %v597 = vsub.f32 %v591, %v596
      %v598 = vand.u32 2147483647, %v597
      %v599 = vadd.f32 %v588, %v598
      %v600 = vld [vmem:[%s256 + $0xb] sm:$0x1]
      %v601 = vld [vmem:[%s256 + $0x1b] sm:$0x1]
      %602 = vset.pattern.permute.xlu0 11
      %603 = vperm.xlu0 %602, %v334
      %v604 = vpop.permute.xlu0 %603
      %v606 = vlaneseq
      %v607 = vshrl.u32 %v606, 7
      %v608 = vsub.s32 0, %v607
      %v609 = vrot.slane %v600, %v608
      %v610 = vsub.f32 %v604, %v609
      %v611 = vand.u32 2147483647, %v610
      %v612 = vadd.f32 %v599, %v611
      %613 = vset.pattern.permute.xlu0 27
      %614 = vperm.xlu0 %613, %v334
      %v615 = vpop.permute.xlu0 %614
      %v617 = vlaneseq
      %v618 = vshrl.u32 %v617, 7
      %v619 = vsub.s32 0, %v618
      %v620 = vrot.slane %v601, %v619
      %v621 = vsub.f32 %v615, %v620
      %v622 = vand.u32 2147483647, %v621
      %v623 = vadd.f32 %v612, %v622
      %v624 = vld [vmem:[%s256 + $0xc] sm:$0x1]
      %v625 = vld [vmem:[%s256 + $0x1c] sm:$0x1]
      %626 = vset.pattern.permute.xlu0 12
      %627 = vperm.xlu0 %626, %v334
      %v628 = vpop.permute.xlu0 %627
      %v630 = vlaneseq
      %v631 = vshrl.u32 %v630, 7
      %v632 = vsub.s32 0, %v631
      %v633 = vrot.slane %v624, %v632
      %v634 = vsub.f32 %v628, %v633
      %v635 = vand.u32 2147483647, %v634
      %v636 = vadd.f32 %v623, %v635
      %637 = vset.pattern.permute.xlu0 28
      %638 = vperm.xlu0 %637, %v334
      %v639 = vpop.permute.xlu0 %638
      %v641 = vlaneseq
      %v642 = vshrl.u32 %v641, 7
      %v643 = vsub.s32 0, %v642
      %v644 = vrot.slane %v625, %v643
      %v645 = vsub.f32 %v639, %v644
      %v646 = vand.u32 2147483647, %v645
      %v647 = vadd.f32 %v636, %v646
      %v648 = vld [vmem:[%s256 + $0xd] sm:$0x1]
      %v649 = vld [vmem:[%s256 + $0x1d] sm:$0x1]
      %650 = vset.pattern.permute.xlu0 13
      %651 = vperm.xlu0 %650, %v334
      %v652 = vpop.permute.xlu0 %651
      %v654 = vlaneseq
      %v655 = vshrl.u32 %v654, 7
      %v656 = vsub.s32 0, %v655
      %v657 = vrot.slane %v648, %v656
      %v658 = vsub.f32 %v652, %v657
      %v659 = vand.u32 2147483647, %v658
      %v660 = vadd.f32 %v647, %v659
      %661 = vset.pattern.permute.xlu0 29
      %662 = vperm.xlu0 %661, %v334
      %v663 = vpop.permute.xlu0 %662
      %v665 = vlaneseq
      %v666 = vshrl.u32 %v665, 7
      %v667 = vsub.s32 0, %v666
      %v668 = vrot.slane %v649, %v667
      %v669 = vsub.f32 %v663, %v668
      %v670 = vand.u32 2147483647, %v669
      %v671 = vadd.f32 %v660, %v670
      %v672 = vld [vmem:[%s256 + $0xe] sm:$0x1]
      %v673 = vld [vmem:[%s256 + $0x1e] sm:$0x1]
      %674 = vset.pattern.permute.xlu0 14
      %675 = vperm.xlu0 %674, %v334
      %v676 = vpop.permute.xlu0 %675
      %v678 = vlaneseq
      %v679 = vshrl.u32 %v678, 7
      %v680 = vsub.s32 0, %v679
      %v681 = vrot.slane %v672, %v680
      %v682 = vsub.f32 %v676, %v681
      %v683 = vand.u32 2147483647, %v682
      %v684 = vadd.f32 %v671, %v683
      %685 = vset.pattern.permute.xlu0 30
      %686 = vperm.xlu0 %685, %v334
      %v687 = vpop.permute.xlu0 %686
      %v689 = vlaneseq
      %v690 = vshrl.u32 %v689, 7
      %v691 = vsub.s32 0, %v690
      %v692 = vrot.slane %v673, %v691
      %v693 = vsub.f32 %v687, %v692
      %v694 = vand.u32 2147483647, %v693
      %v695 = vadd.f32 %v684, %v694
      %v696 = vld [vmem:[%s256 + $0xf] sm:$0x1]
      %v697 = vld [vmem:[%s256 + $0x1f] sm:$0x1]
      %698 = vset.pattern.permute.xlu0 15
      %699 = vperm.xlu0 %698, %v334
      %v700 = vpop.permute.xlu0 %699
      %v702 = vlaneseq
      %v703 = vshrl.u32 %v702, 7
      %v704 = vsub.s32 0, %v703
      %v705 = vrot.slane %v696, %v704
      %v706 = vsub.f32 %v700, %v705
      %v707 = vand.u32 2147483647, %v706
      %v708 = vadd.f32 %v695, %v707
      %709 = vset.pattern.permute.xlu0 31
      %710 = vperm.xlu0 %709, %v334
      %v711 = vpop.permute.xlu0 %710
      %v713 = vlaneseq
      %v714 = vshrl.u32 %v713, 7
      %v715 = vsub.s32 0, %v714
      %v716 = vrot.slane %v697, %v715
      %v717 = vsub.f32 %v711, %v716
      %v718 = vand.u32 2147483647, %v717
      %v719 = vadd.f32 %v708, %v718
      %v720 = vld [vmem:[%s263] sm:$0xff]
      %v721 = vadd.f32 %v720, %v719
      %722 = vst [vmem:[%s263] sm:$0xff] %v721
      %p723 = scmp.lt.s32.totalorder %s19, 1
      %s724 = scalar_select %p723, %s19, 1
      %p725 = scmp.lt.s32.totalorder %s20, 0
      %s726 = scalar_select %p725, %s20, 0
      %s727 = sadd.s32 %s726, %s724
      %s728 = smul.addr %s727, 8
      %s729 = scalar_lea.vmem %s4, %s728
      // Predicated region
      $region37: #{matcher_cost_matrix.1} parent=35 // pred_check
        %p730 = pneg %p151
      $region38: #{matcher_cost_matrix.1} parent=35 // pred_check_branch
        %732 = sbr.rel (%p730) target = $region40
      $region39: #{matcher_cost_matrix.1} parent=35 // pred_region
        _
      $region40: #{matcher_cost_matrix.1} parent=35 // pred_fallthru
        _
    $region36: #{matcher_cost_matrix.1} parent=5 // pred_fallthru
      _
    %p733 = scmp.le.s32.totalorder 2, %s10
    // Predicated region
    $region41: #{matcher_cost_matrix.1} parent=5 // pred_check
      %p734 = pneg %p733
    $region42: #{matcher_cost_matrix.1} parent=5 // pred_check_branch
      %736 = sbr.rel (%p734) target = $region44
    $region43: #{matcher_cost_matrix.1} parent=5 // pred_region
      %s737 = ssub.s32 %s10, 2
      // Predicated region
      $region45: #{matcher_cost_matrix.1} parent=43 // pred_check
        %p738 = pneg %p157
      $region46: #{matcher_cost_matrix.1} parent=43 // pred_check_branch
        %740 = sbr.rel (%p738) target = $region48
      $region47: #{matcher_cost_matrix.1} parent=43 // pred_region
        %p741 = scmp.lt.s32.totalorder %s21, 1
        %s742 = scalar_select %p741, %s21, 1
        %p743 = scmp.lt.s32.totalorder %s22, 0
        %s744 = scalar_select %p743, %s22, 0
        %s745 = sadd.s32 %s744, %s742
        %s746 = smul.addr %s745, 8
        %s747 = scalar_lea.vmem %s4, %s746
      $region48: #{matcher_cost_matrix.1} parent=43 // pred_fallthru
        _
    $region44: #{matcher_cost_matrix.1} parent=5 // pred_fallthru
      _
  $region6: #{matcher_cost_matrix.1} parent=0 // loop_footer
    %s14 = sadd.s32 1, %s10
  $region7: #{matcher_cost_matrix.1} parent=0 // loop_footer_branch
    %9 = sbr.rel target = $region3
  $region8: #{matcher_cost_matrix.1} parent=0 // loop_exit
    _

</llo_original>
